<compile_context>
chip_gen: v7x
topology: tpu7x:2x2x1
jax: 0.10.0
libtpu: 0.0.40
codegen_flags: <defaults>
</compile_context>

<pallas_src>
import jax
import jax.numpy as jnp
from jax.experimental import pallas as pl
from jax.experimental.pallas import tpu as pltpu


def _round_up(n, m):
    return ((n + m - 1) // m) * m


def mlp_kernel(xt_ref, w1_ref, b1_ref, w2_ref, b2_ref, w3_ref, b3_ref,
               w4_ref, b4_ref, o_ref):
    """All activations are [features, TILE_B] (batch packed into lanes)."""
    cd = w2_ref.dtype                                   # bf16 (default) or f32

    # Layer 1: [64,4] @ [4,TB].  K=4 "wastes" the idle MXU, which is fine: it
    # keeps the saturating VALU/store path free.  f32 operands preserve input
    # precision at negligible cost.
    h = jnp.dot(w1_ref[...], xt_ref[...],
                preferred_element_type=jnp.float32) + b1_ref[...]
    h = jnp.maximum(h, 0.0)                             # [64, TB] f32

    # Layer 2: [128,64] @ [64,TB] -> [128,TB]; bf16 operands, f32 accumulate.
    h = jnp.dot(w2_ref[...], h.astype(cd),
                preferred_element_type=jnp.float32) + b2_ref[...]
    h = jnp.maximum(h, 0.0)                             # [128, TB] f32

    # Layer 3: [64,128] @ [128,TB] -> [64,TB]
    h = jnp.dot(w3_ref[...], h.astype(cd),
                preferred_element_type=jnp.float32) + b3_ref[...]
    h = jnp.maximum(h, 0.0)                             # [64, TB] f32

    # Layer 4: [1,64] @ [64,TB] -> lane-dense [1,TB] output row (no relayout).
    out = jnp.dot(w4_ref[...], h.astype(w4_ref.dtype),
                  preferred_element_type=jnp.float32) + b4_ref[...]
    o_ref[...] = out.astype(o_ref.dtype)


def mlp_forward(x, params, *, tile_b=2048, compute_dtype=jnp.bfloat16):
    """x: [B, 4] -> [B, 1] float32."""
    w1, b1, w2, b2, w3, b3, w4, b4 = params
    B = x.shape[0]

    # Batch-in-lanes: transpose x once in the wrapper (tiny: 4*B floats) so the
    # kernel's x tiles are lane-dense (4, TILE_B) instead of (TILE_B, 4).
    xt = x.astype(jnp.float32).T                        # [4, B]

    # Tiny-batch guard only: the lane dim must support one full 128-wide block.
    Bp = B
    if B < 128:
        xt = jnp.pad(xt, ((0, 0), (0, 128 - B)))
        Bp = 128

    b_ceil = _round_up(Bp, 128)
    tile_b = max(128, (min(int(tile_b), b_ceil) // 128) * 128)
    # v7x megacore: keep >= 2 grid steps when the batch allows, so both
    # TensorCores get tiles under dimension_semantics=("parallel",).
    half = _round_up(pl.cdiv(b_ceil, 2), 128)
    if b_ceil >= 256 and tile_b > half:
        tile_b = half
    num_tiles = pl.cdiv(Bp, tile_b)

    cd = compute_dtype
    # (out, in)-major weights and column biases for the [features, TB] layout.
    w1t = w1.T.astype(jnp.float32)                      # [64, 4]
    w2t = w2.T.astype(cd)                               # [128, 64]
    w3t = w3.T.astype(cd)                               # [64, 128]
    w4t = w4.T.astype(cd)                               # [1, 64]
    b1c = b1.reshape(-1, 1).astype(jnp.float32)         # [64, 1]
    b2c = b2.reshape(-1, 1).astype(jnp.float32)         # [128, 1]
    b3c = b3.reshape(-1, 1).astype(jnp.float32)         # [64, 1]
    b4c = b4.reshape(-1, 1).astype(jnp.float32)         # [1, 1]

    def const2d(arr):
        # Constant index_map -> DMA'd once, VMEM-resident across grid steps.
        # (pipeline_mode=pl.Buffered(1) would also drop ~130 KiB of default
        #  double-buffering; skipped as a negligible win.)
        return pl.BlockSpec(arr.shape, lambda i: (0, 0))

    out_row = pl.pallas_call(
        mlp_kernel,
        out_shape=jax.ShapeDtypeStruct((1, Bp), jnp.float32),
        grid=(num_tiles,),
        in_specs=[
            pl.BlockSpec((4, tile_b), lambda i: (0, i)),   # x^T: batch-tiled
            const2d(w1t), const2d(b1c),
            const2d(w2t), const2d(b2c),
            const2d(w3t), const2d(b3c),
            const2d(w4t), const2d(b4c),
        ],
        out_specs=pl.BlockSpec((1, tile_b), lambda i: (0, i)),  # lane-dense row
        compiler_params=pltpu.CompilerParams(
            dimension_semantics=("parallel",),
        ),
    )(xt, w1t, b1c, w2t, b2c, w3t, b3c, w4t, b4c)

    if Bp != B:
        out_row = out_row[:, :B]
    return out_row.reshape(B, 1)


def init_params(key):
    """Deterministic init mimicking nn.Linear default (uniform +/- 1/sqrt(fan_in))."""
    dims = [(4, 64), (64, 128), (128, 64), (64, 1)]
    params = []
    for (fan_in, fan_out) in dims:
        key, kw, kb = jax.random.split(key, 3)
        bound = 1.0 / jnp.sqrt(fan_in)
        w = jax.random.uniform(kw, (fan_in, fan_out), jnp.float32, -bound, bound)
        b = jax.random.uniform(kb, (1, fan_out), jnp.float32, -bound, bound)
        params.extend([w, b])
    return tuple(params)


def mlp_reference(x, params):
    (w1, b1, w2, b2, w3, b3, w4, b4) = params
    h = jnp.maximum(x @ w1 + b1, 0.0)
    h = jnp.maximum(h @ w2 + b2, 0.0)
    h = jnp.maximum(h @ w3 + b3, 0.0)
    return h @ w4 + b4


if __name__ == "__main__":
    key = jax.random.PRNGKey(0)
    key, kx = jax.random.split(key)

    B = 200  # non-multiple of 128 -> exercises the ragged last batch tile
    x = jax.random.normal(kx, (B, 4), jnp.float32)
    params = init_params(key)
    ref = mlp_reference(x, params)

    # Default path: bf16 MXU operands for layers 2-4 (bf16-native MXU on
    # v5e/v6e/v7x); accumulation / bias / ReLU stay f32.
    out = jax.block_until_ready(mlp_forward(x, params))
    assert out.shape == (B, 1), out.shape
    assert jnp.allclose(out, ref, atol=5e-2, rtol=5e-2), "bf16 kernel mismatch vs reference"

    # f32-operand path for a tight numerical check.
    out_f32 = jax.block_until_ready(
        mlp_forward(x, params, compute_dtype=jnp.float32))
    assert out_f32.shape == (B, 1), out_f32.shape
    assert jnp.allclose(out_f32, ref, atol=1e-4, rtol=1e-4), "f32 kernel mismatch vs reference"

    print("KERNEL_OK")
</pallas_src>

<mosaic_0001>
module attributes {stable_mosaic.version = 11 : i64} {
  func.func @mlp_kernel(%arg0: i32, %arg1: memref<4x128xf32, #tpu.memory_space<vmem>>, %arg2: memref<64x4xf32, #tpu.memory_space<vmem>>, %arg3: memref<64x1xf32, #tpu.memory_space<vmem>>, %arg4: memref<128x64xbf16, #tpu.memory_space<vmem>>, %arg5: memref<128x1xf32, #tpu.memory_space<vmem>>, %arg6: memref<64x128xbf16, #tpu.memory_space<vmem>>, %arg7: memref<64x1xf32, #tpu.memory_space<vmem>>, %arg8: memref<1x64xbf16, #tpu.memory_space<vmem>>, %arg9: memref<1x1xf32, #tpu.memory_space<vmem>>, %arg10: memref<1x128xf32, #tpu.memory_space<vmem>>) attributes {dimension_semantics = [#tpu.dimension_semantics<parallel>], iteration_bounds = array<i64: 2>, scalar_prefetch = 0 : i64, scratch_operands = 0 : i64, tpu.core_type = #tpu.core_type<tc>, window_params = [{transform_indices = @transform_0, window_bounds = array<i64: 4, 128>}, {pipeline_mode = #tpu.pipeline_mode<synchronous>, transform_indices = @transform_1, window_bounds = array<i64: 64, 4>}, {pipeline_mode = #tpu.pipeline_mode<synchronous>, transform_indices = @transform_2, window_bounds = array<i64: 64, 1>}, {pipeline_mode = #tpu.pipeline_mode<synchronous>, transform_indices = @transform_3, window_bounds = array<i64: 128, 64>}, {pipeline_mode = #tpu.pipeline_mode<synchronous>, transform_indices = @transform_4, window_bounds = array<i64: 128, 1>}, {pipeline_mode = #tpu.pipeline_mode<synchronous>, transform_indices = @transform_5, window_bounds = array<i64: 64, 128>}, {pipeline_mode = #tpu.pipeline_mode<synchronous>, transform_indices = @transform_6, window_bounds = array<i64: 64, 1>}, {pipeline_mode = #tpu.pipeline_mode<synchronous>, transform_indices = @transform_7, window_bounds = array<i64: 1, 64>}, {pipeline_mode = #tpu.pipeline_mode<synchronous>, transform_indices = @transform_8, window_bounds = array<i64: 1, 1>}, {transform_indices = @transform_9, window_bounds = array<i64: 1, 128>}]} {
    %c0 = arith.constant 0 : index
    %c0_0 = arith.constant 0 : index
    %0 = vector.load %arg2[%c0, %c0_0] : memref<64x4xf32, #tpu.memory_space<vmem>>, vector<64x4xf32>
    %c0_1 = arith.constant 0 : index
    %c0_2 = arith.constant 0 : index
    %1 = vector.load %arg1[%c0_1, %c0_2] : memref<4x128xf32, #tpu.memory_space<vmem>>, vector<4x128xf32>
    %cst = arith.constant dense<0.000000e+00> : vector<64x128xf32>
    %2 = tpu.matmul %0, %1, %cst {dimension_numbers = #tpu.dot_dimension_numbers<[1], [0], [0], [1], [0, 0, 1, 1], [], []>} : vector<64x4xf32>, vector<4x128xf32>, vector<64x128xf32> -> vector<64x128xf32>
    %c0_3 = arith.constant 0 : index
    %c0_4 = arith.constant 0 : index
    %3 = vector.load %arg3[%c0_3, %c0_4] : memref<64x1xf32, #tpu.memory_space<vmem>>, vector<64x1xf32>
    %4 = vector.broadcast %3 : vector<64x1xf32> to vector<64x128xf32>
    %5 = arith.addf %2, %4 : vector<64x128xf32>
    %cst_5 = arith.constant 0.000000e+00 : f32
    %6 = vector.broadcast %cst_5 : f32 to vector<64x128xf32>
    %7 = arith.maximumf %5, %6 : vector<64x128xf32>
    %c0_6 = arith.constant 0 : index
    %c0_7 = arith.constant 0 : index
    %8 = vector.load %arg4[%c0_6, %c0_7] : memref<128x64xbf16, #tpu.memory_space<vmem>>, vector<128x64xbf16>
    %9 = arith.truncf %7 : vector<64x128xf32> to vector<64x128xbf16>
    %cst_8 = arith.constant dense<0.000000e+00> : vector<128x128xf32>
    %10 = tpu.matmul %8, %9, %cst_8 {dimension_numbers = #tpu.dot_dimension_numbers<[1], [0], [0], [1], [0, 0, 1, 1], [], []>} : vector<128x64xbf16>, vector<64x128xbf16>, vector<128x128xf32> -> vector<128x128xf32>
    %c0_9 = arith.constant 0 : index
    %c0_10 = arith.constant 0 : index
    %11 = vector.load %arg5[%c0_9, %c0_10] : memref<128x1xf32, #tpu.memory_space<vmem>>, vector<128x1xf32>
    %12 = vector.broadcast %11 : vector<128x1xf32> to vector<128x128xf32>
    %13 = arith.addf %10, %12 : vector<128x128xf32>
    %cst_11 = arith.constant 0.000000e+00 : f32
    %14 = vector.broadcast %cst_11 : f32 to vector<128x128xf32>
    %15 = arith.maximumf %13, %14 : vector<128x128xf32>
    %c0_12 = arith.constant 0 : index
    %c0_13 = arith.constant 0 : index
    %16 = vector.load %arg6[%c0_12, %c0_13] : memref<64x128xbf16, #tpu.memory_space<vmem>>, vector<64x128xbf16>
    %17 = arith.truncf %15 : vector<128x128xf32> to vector<128x128xbf16>
    %cst_14 = arith.constant dense<0.000000e+00> : vector<64x128xf32>
    %18 = tpu.matmul %16, %17, %cst_14 {dimension_numbers = #tpu.dot_dimension_numbers<[1], [0], [0], [1], [0, 0, 1, 1], [], []>} : vector<64x128xbf16>, vector<128x128xbf16>, vector<64x128xf32> -> vector<64x128xf32>
    %c0_15 = arith.constant 0 : index
    %c0_16 = arith.constant 0 : index
    %19 = vector.load %arg7[%c0_15, %c0_16] : memref<64x1xf32, #tpu.memory_space<vmem>>, vector<64x1xf32>
    %20 = vector.broadcast %19 : vector<64x1xf32> to vector<64x128xf32>
    %21 = arith.addf %18, %20 : vector<64x128xf32>
    %cst_17 = arith.constant 0.000000e+00 : f32
    %22 = vector.broadcast %cst_17 : f32 to vector<64x128xf32>
    %23 = arith.maximumf %21, %22 : vector<64x128xf32>
    %c0_18 = arith.constant 0 : index
    %c0_19 = arith.constant 0 : index
    %24 = vector.load %arg8[%c0_18, %c0_19] : memref<1x64xbf16, #tpu.memory_space<vmem>>, vector<1x64xbf16>
    %25 = arith.truncf %23 : vector<64x128xf32> to vector<64x128xbf16>
    %cst_20 = arith.constant dense<0.000000e+00> : vector<1x128xf32>
    %26 = tpu.matmul %24, %25, %cst_20 {dimension_numbers = #tpu.dot_dimension_numbers<[1], [0], [0], [1], [0, 0, 1, 1], [], []>} : vector<1x64xbf16>, vector<64x128xbf16>, vector<1x128xf32> -> vector<1x128xf32>
    %c0_21 = arith.constant 0 : index
    %c0_22 = arith.constant 0 : index
    %27 = vector.load %arg9[%c0_21, %c0_22] : memref<1x1xf32, #tpu.memory_space<vmem>>, vector<1x1xf32>
    %28 = vector.broadcast %27 : vector<1x1xf32> to vector<1x128xf32>
    %29 = arith.addf %26, %28 : vector<1x128xf32>
    %c0_23 = arith.constant 0 : index
    %c0_24 = arith.constant 0 : index
    %30 = vector.load %arg10[%c0_23, %c0_24] : memref<1x128xf32, #tpu.memory_space<vmem>>, vector<1x128xf32>
    tpu.vector_store %arg10[%c0_23, %c0_24], %29 {strides = array<i32>} : memref<1x128xf32, #tpu.memory_space<vmem>>, vector<1x128xf32>,
    return
  }
  func.func @transform_0(%arg0: i32) -> (i32, i32) {
    %c0_i32 = arith.constant 0 : i32
    %c0_i32_0 = arith.constant 0 : i32
    return %c0_i32, %arg0 : i32, i32
  }
  func.func @transform_1(%arg0: i32) -> (i32, i32) {
    %c0_i32 = arith.constant 0 : i32
    %c0_i32_0 = arith.constant 0 : i32
    %c0_i32_1 = arith.constant 0 : i32
    return %c0_i32, %c0_i32_0 : i32, i32
  }
  func.func @transform_2(%arg0: i32) -> (i32, i32) {
    %c0_i32 = arith.constant 0 : i32
    %c0_i32_0 = arith.constant 0 : i32
    %c0_i32_1 = arith.constant 0 : i32
    return %c0_i32, %c0_i32_0 : i32, i32
  }
  func.func @transform_3(%arg0: i32) -> (i32, i32) {
    %c0_i32 = arith.constant 0 : i32
    %c0_i32_0 = arith.constant 0 : i32
    %c0_i32_1 = arith.constant 0 : i32
    return %c0_i32, %c0_i32_0 : i32, i32
  }
  func.func @transform_4(%arg0: i32) -> (i32, i32) {
    %c0_i32 = arith.constant 0 : i32
    %c0_i32_0 = arith.constant 0 : i32
    %c0_i32_1 = arith.constant 0 : i32
    return %c0_i32, %c0_i32_0 : i32, i32
  }
  func.func @transform_5(%arg0: i32) -> (i32, i32) {
    %c0_i32 = arith.constant 0 : i32
    %c0_i32_0 = arith.constant 0 : i32
    %c0_i32_1 = arith.constant 0 : i32
    return %c0_i32, %c0_i32_0 : i32, i32
  }
  func.func @transform_6(%arg0: i32) -> (i32, i32) {
    %c0_i32 = arith.constant 0 : i32
    %c0_i32_0 = arith.constant 0 : i32
    %c0_i32_1 = arith.constant 0 : i32
    return %c0_i32, %c0_i32_0 : i32, i32
  }
  func.func @transform_7(%arg0: i32) -> (i32, i32) {
    %c0_i32 = arith.constant 0 : i32
    %c0_i32_0 = arith.constant 0 : i32
    %c0_i32_1 = arith.constant 0 : i32
    return %c0_i32, %c0_i32_0 : i32, i32
  }
  func.func @transform_8(%arg0: i32) -> (i32, i32) {
    %c0_i32 = arith.constant 0 : i32
    %c0_i32_0 = arith.constant 0 : i32
    %c0_i32_1 = arith.constant 0 : i32
    return %c0_i32, %c0_i32_0 : i32, i32
  }
  func.func @transform_9(%arg0: i32) -> (i32, i32) {
    %c0_i32 = arith.constant 0 : i32
    %c0_i32_0 = arith.constant 0 : i32
    return %c0_i32, %arg0 : i32, i32
  }
}

</mosaic_0001>

<llo_original>
// kernel: tpu_custom_call.1
$region0: #{tpu_custom_call.1}
  #allocation0 [shape = 'u32[]', space=smem, size = 0x4, offset = 0x4, fixed_abs, tag = 'smem constant byte address 0x4 - core index']
  #allocation1 [shape = 'u32[144,128]{1,0:T(1,128)}', space=vmem, size = 0x12000, scoped, tag = 'internal scratch']
  #allocation2 [shape = 'f32[1,1]{1,0:T(1,128)S(1)}', space=vmem, size = 0x200, scoped, tag = 'scoped memory for tpu_custom_call.1']
  %s0 = inlined_call_operand.vmem [shape: f32[4,200], index: 0, kind: input, shape index: {}]
  %s1 = inlined_call_operand.vmem [shape: f32[64,4], index: 1, kind: input, shape index: {}]
  %s2 = inlined_call_operand.vmem [shape: f32[64,1], index: 2, kind: input, shape index: {}]
  %s3 = inlined_call_operand.vmem [shape: bf16[128,64], index: 3, kind: input, shape index: {}]
  %s4 = inlined_call_operand.vmem [shape: f32[128,1], index: 4, kind: input, shape index: {}]
  %s5 = inlined_call_operand.vmem [shape: bf16[64,128], index: 5, kind: input, shape index: {}]
  %s6 = inlined_call_operand.vmem [shape: f32[64,1], index: 6, kind: input, shape index: {}]
  %s7 = inlined_call_operand.vmem [shape: bf16[1,64], index: 7, kind: input, shape index: {}]
  %s8 = inlined_call_operand.<no memory space> [shape: f32[1,1], index: 8, kind: input, shape index: {}]
  %s9 = inlined_call_operand.hbm [shape: f32[1,200], index: 9, kind: output, shape index: {}]
  %s10 = sld [smem:[#allocation0]]
  $region69: #{tpu_custom_call.1} parent=0
    _
  %s12 = ssub.s32 1, %s10
  %s13 = scalar_select 0, %s12, %s10
  %v14 = vstv %s8
  %15 = vst [vmem:[#allocation2] sm:$0x1] %v14
  $region1: #{tpu_custom_call.1} parent=0
    #allocation3 [shape = 'u8[1024]{0}', space=vmem, size = 0x400, scoped, tag = 'output window, operand 0']
    #allocation4 [shape = 's32[2]{0}', space=sflag, size = 0x8, scoped, tag = 'scoped memory for tpu_custom_call.1']
    %16 = vsyncpa [#allocation4], 0
    %s17 = scalar_lea.sflag [#allocation4], 1
    %18 = vsyncpa %s17, 0
    loop: start=0, step=1, limit=4
    $region2: #{tpu_custom_call.1} parent=1 // loop_pre_header
      _
    $region3: #{tpu_custom_call.1} parent=1 // loop_header
      %s20 = sphi 0, %s24
      %p21 = scmp.ge.s32.totalorder %s20, 4
      %s30 = sphi 0, %s32
      %s33 = sphi 0, %s30
      %s34 = sphi 0, %s33
      %s50 = sphi 0, %s34
      %s54 = sphi 0, %s54
      %s56 = sphi 0, %s54
      %s57 = sphi 0, %s56
      %s71 = sphi 0, %s57
      %s75 = sphi 0, %s75
      %s77 = sphi 0, %s75
      %s78 = sphi 0, %s77
      %s92 = sphi 0, %s78
      %s96 = sphi 0, %s96
      %s98 = sphi 0, %s96
      %s99 = sphi 0, %s98
      %s113 = sphi 0, %s99
      %s117 = sphi 0, %s117
      %s119 = sphi 0, %s117
      %s120 = sphi 0, %s119
      %s134 = sphi 0, %s120
      %s138 = sphi 0, %s138
      %s140 = sphi 0, %s138
      %s141 = sphi 0, %s140
      %s155 = sphi 0, %s141
      %s159 = sphi 0, %s159
      %s161 = sphi 0, %s159
      %s162 = sphi 0, %s161
      %s176 = sphi 0, %s162
      %s180 = sphi 0, %s180
      %s182 = sphi 0, %s180
      %s183 = sphi 0, %s182
      %s197 = sphi 0, %s183
      %s201 = sphi 0, %s201
      %s203 = sphi 0, %s201
      %s204 = sphi 0, %s203
      %s218 = sphi 0, %s204
      %s224 = sphi 0, %s226
      %s227 = sphi 0, %s224
      %s228 = sphi 0, %s227
      %s244 = sphi 0, %s228
    $region4: #{tpu_custom_call.1} parent=1 // loop_header_branch
      %23 = sbr.rel (%p21) target = $region8
    $region5: #{tpu_custom_call.1} parent=1 // loop_body
      %s25 = ssub.s32 %s20, 1
      %s26 = ssub.s32 %s20, 2
      %s27 = sadd.s32 %s20, 1
      %s28 = ssub.s32 %s20, %s27
      %p29 = scmp.eq.s32.totalorder %s28, 0
      %s31 = sadd.s32 %s30, 1
      %s32 = scalar_select %p29, %s30, %s31
      %p35 = pneg %p29
      %p36 = scmp.eq.s32.totalorder %s20, 1
      %p37 = por %p35, %p36
      %p38 = scmp.ne.s32.totalorder %s30, %s33
      %p39 = scmp.eq.s32.totalorder %s20, 0
      %p40 = por %p38, %p39
      %p41 = scmp.ne.s32.totalorder %s30, %s33
      %p42 = scmp.eq.s32.totalorder %s25, 1
      %p43 = por %p41, %p42
      %p44 = scmp.ne.s32.totalorder %s33, %s34
      %p45 = scmp.eq.s32.totalorder %s25, 0
      %p46 = por %p44, %p45
      %p47 = scmp.ne.s32.totalorder %s33, %s34
      %p48 = scmp.eq.s32.totalorder %s26, 1
      %p49 = por %p47, %p48
      %p51 = scmp.ne.s32.totalorder %s34, %s50
      %p52 = scmp.eq.s32.totalorder %s26, 0
      %p53 = por %p51, %p52
      %s55 = sadd.s32 %s54, 1
      %p58 = scmp.eq.s32.totalorder %s20, 1
      %p59 = scmp.ne.s32.totalorder %s54, %s56
      %p60 = scmp.eq.s32.totalorder %s20, 0
      %p61 = por %p59, %p60
      %p62 = scmp.ne.s32.totalorder %s54, %s56
      %p63 = scmp.eq.s32.totalorder %s25, 1
      %p64 = por %p62, %p63
      %p65 = scmp.ne.s32.totalorder %s56, %s57
      %p66 = scmp.eq.s32.totalorder %s25, 0
      %p67 = por %p65, %p66
      %p68 = scmp.ne.s32.totalorder %s56, %s57
      %p69 = scmp.eq.s32.totalorder %s26, 1
      %p70 = por %p68, %p69
      %p72 = scmp.ne.s32.totalorder %s57, %s71
      %p73 = scmp.eq.s32.totalorder %s26, 0
      %p74 = por %p72, %p73
      %s76 = sadd.s32 %s75, 1
      %p79 = scmp.eq.s32.totalorder %s20, 1
      %p80 = scmp.ne.s32.totalorder %s75, %s77
      %p81 = scmp.eq.s32.totalorder %s20, 0
      %p82 = por %p80, %p81
      %p83 = scmp.ne.s32.totalorder %s75, %s77
      %p84 = scmp.eq.s32.totalorder %s25, 1
      %p85 = por %p83, %p84
      %p86 = scmp.ne.s32.totalorder %s77, %s78
      %p87 = scmp.eq.s32.totalorder %s25, 0
      %p88 = por %p86, %p87
      %p89 = scmp.ne.s32.totalorder %s77, %s78
      %p90 = scmp.eq.s32.totalorder %s26, 1
      %p91 = por %p89, %p90
      %p93 = scmp.ne.s32.totalorder %s78, %s92
      %p94 = scmp.eq.s32.totalorder %s26, 0
      %p95 = por %p93, %p94
      %s97 = sadd.s32 %s96, 1
      %p100 = scmp.eq.s32.totalorder %s20, 1
      %p101 = scmp.ne.s32.totalorder %s96, %s98
      %p102 = scmp.eq.s32.totalorder %s20, 0
      %p103 = por %p101, %p102
      %p104 = scmp.ne.s32.totalorder %s96, %s98
      %p105 = scmp.eq.s32.totalorder %s25, 1
      %p106 = por %p104, %p105
      %p107 = scmp.ne.s32.totalorder %s98, %s99
      %p108 = scmp.eq.s32.totalorder %s25, 0
      %p109 = por %p107, %p108
      %p110 = scmp.ne.s32.totalorder %s98, %s99
      %p111 = scmp.eq.s32.totalorder %s26, 1
      %p112 = por %p110, %p111
      %p114 = scmp.ne.s32.totalorder %s99, %s113
      %p115 = scmp.eq.s32.totalorder %s26, 0
      %p116 = por %p114, %p115
      %s118 = sadd.s32 %s117, 1
      %p121 = scmp.eq.s32.totalorder %s20, 1
      %p122 = scmp.ne.s32.totalorder %s117, %s119
      %p123 = scmp.eq.s32.totalorder %s20, 0
      %p124 = por %p122, %p123
      %p125 = scmp.ne.s32.totalorder %s117, %s119
      %p126 = scmp.eq.s32.totalorder %s25, 1
      %p127 = por %p125, %p126
      %p128 = scmp.ne.s32.totalorder %s119, %s120
      %p129 = scmp.eq.s32.totalorder %s25, 0
      %p130 = por %p128, %p129
      %p131 = scmp.ne.s32.totalorder %s119, %s120
      %p132 = scmp.eq.s32.totalorder %s26, 1
      %p133 = por %p131, %p132
      %p135 = scmp.ne.s32.totalorder %s120, %s134
      %p136 = scmp.eq.s32.totalorder %s26, 0
      %p137 = por %p135, %p136
      %s139 = sadd.s32 %s138, 1
      %p142 = scmp.eq.s32.totalorder %s20, 1
      %p143 = scmp.ne.s32.totalorder %s138, %s140
      %p144 = scmp.eq.s32.totalorder %s20, 0
      %p145 = por %p143, %p144
      %p146 = scmp.ne.s32.totalorder %s138, %s140
      %p147 = scmp.eq.s32.totalorder %s25, 1
      %p148 = por %p146, %p147
      %p149 = scmp.ne.s32.totalorder %s140, %s141
      %p150 = scmp.eq.s32.totalorder %s25, 0
      %p151 = por %p149, %p150
      %p152 = scmp.ne.s32.totalorder %s140, %s141
      %p153 = scmp.eq.s32.totalorder %s26, 1
      %p154 = por %p152, %p153
      %p156 = scmp.ne.s32.totalorder %s141, %s155
      %p157 = scmp.eq.s32.totalorder %s26, 0
      %p158 = por %p156, %p157
      %s160 = sadd.s32 %s159, 1
      %p163 = scmp.eq.s32.totalorder %s20, 1
      %p164 = scmp.ne.s32.totalorder %s159, %s161
      %p165 = scmp.eq.s32.totalorder %s20, 0
      %p166 = por %p164, %p165
      %p167 = scmp.ne.s32.totalorder %s159, %s161
      %p168 = scmp.eq.s32.totalorder %s25, 1
      %p169 = por %p167, %p168
      %p170 = scmp.ne.s32.totalorder %s161, %s162
      %p171 = scmp.eq.s32.totalorder %s25, 0
      %p172 = por %p170, %p171
      %p173 = scmp.ne.s32.totalorder %s161, %s162
      %p174 = scmp.eq.s32.totalorder %s26, 1
      %p175 = por %p173, %p174
      %p177 = scmp.ne.s32.totalorder %s162, %s176
      %p178 = scmp.eq.s32.totalorder %s26, 0
      %p179 = por %p177, %p178
      %s181 = sadd.s32 %s180, 1
      %p184 = scmp.eq.s32.totalorder %s20, 1
      %p185 = scmp.ne.s32.totalorder %s180, %s182
      %p186 = scmp.eq.s32.totalorder %s20, 0
      %p187 = por %p185, %p186
      %p188 = scmp.ne.s32.totalorder %s180, %s182
      %p189 = scmp.eq.s32.totalorder %s25, 1
      %p190 = por %p188, %p189
      %p191 = scmp.ne.s32.totalorder %s182, %s183
      %p192 = scmp.eq.s32.totalorder %s25, 0
      %p193 = por %p191, %p192
      %p194 = scmp.ne.s32.totalorder %s182, %s183
      %p195 = scmp.eq.s32.totalorder %s26, 1
      %p196 = por %p194, %p195
      %p198 = scmp.ne.s32.totalorder %s183, %s197
      %p199 = scmp.eq.s32.totalorder %s26, 0
      %p200 = por %p198, %p199
      %s202 = sadd.s32 %s201, 1
      %p205 = scmp.eq.s32.totalorder %s20, 1
      %p206 = scmp.ne.s32.totalorder %s201, %s203
      %p207 = scmp.eq.s32.totalorder %s20, 0
      %p208 = por %p206, %p207
      %p209 = scmp.ne.s32.totalorder %s201, %s203
      %p210 = scmp.eq.s32.totalorder %s25, 1
      %p211 = por %p209, %p210
      %p212 = scmp.ne.s32.totalorder %s203, %s204
      %p213 = scmp.eq.s32.totalorder %s25, 0
      %p214 = por %p212, %p213
      %p215 = scmp.ne.s32.totalorder %s203, %s204
      %p216 = scmp.eq.s32.totalorder %s26, 1
      %p217 = por %p215, %p216
      %p219 = scmp.ne.s32.totalorder %s204, %s218
      %p220 = scmp.eq.s32.totalorder %s26, 0
      %p221 = por %p219, %p220
      %s222 = ssub.s32 %s20, %s27
      %p223 = scmp.eq.s32.totalorder %s222, 0
      %s225 = sadd.s32 %s224, 1
      %s226 = scalar_select %p223, %s224, %s225
      %p229 = pneg %p223
      %p230 = scmp.eq.s32.totalorder %s20, 1
      %p231 = por %p229, %p230
      %p232 = scmp.ne.s32.totalorder %s224, %s227
      %p233 = scmp.eq.s32.totalorder %s20, 0
      %p234 = por %p232, %p233
      %p235 = scmp.ne.s32.totalorder %s224, %s227
      %p236 = scmp.eq.s32.totalorder %s25, 1
      %p237 = por %p235, %p236
      %p238 = scmp.ne.s32.totalorder %s227, %s228
      %p239 = scmp.eq.s32.totalorder %s25, 0
      %p240 = por %p238, %p239
      %p241 = scmp.ne.s32.totalorder %s227, %s228
      %p242 = scmp.eq.s32.totalorder %s26, 1
      %p243 = por %p241, %p242
      %p245 = scmp.ne.s32.totalorder %s228, %s244
      %p246 = scmp.eq.s32.totalorder %s26, 0
      %p247 = por %p245, %p246
      %p248 = scmp.le.s32.totalorder 1, %s20
      %p249 = scmp.lt.s32.totalorder %s20, 3
      %p250 = pnand %p248, %p249
      %p251 = pneg %p250
      // Predicated region
      $region9: #{tpu_custom_call.1} parent=5 // pred_check
        _
      $region10: #{tpu_custom_call.1} parent=5 // pred_check_branch
        %253 = sbr.rel (%p250) target = $region12
      $region11: #{tpu_custom_call.1} parent=5 // pred_region
        %s254 = ssub.s32 %s20, 1
        // Predicated region
        $region13: #{tpu_custom_call.1} parent=11 // pred_check
          %p255 = pneg %p67
        $region14: #{tpu_custom_call.1} parent=11 // pred_check_branch
          %257 = sbr.rel (%p255) target = $region16
        $region15: #{tpu_custom_call.1} parent=11 // pred_region
          _
        $region16: #{tpu_custom_call.1} parent=11 // pred_fallthru
          _
        // Predicated region
        $region17: #{tpu_custom_call.1} parent=11 // pred_check
          %p258 = pneg %p88
        $region18: #{tpu_custom_call.1} parent=11 // pred_check_branch
          %260 = sbr.rel (%p258) target = $region20
        $region19: #{tpu_custom_call.1} parent=11 // pred_region
          _
        $region20: #{tpu_custom_call.1} parent=11 // pred_fallthru
          _
        // Predicated region
        $region21: #{tpu_custom_call.1} parent=11 // pred_check
          %p261 = pneg %p109
        $region22: #{tpu_custom_call.1} parent=11 // pred_check_branch
          %263 = sbr.rel (%p261) target = $region24
        $region23: #{tpu_custom_call.1} parent=11 // pred_region
          _
        $region24: #{tpu_custom_call.1} parent=11 // pred_fallthru
          _
        // Predicated region
        $region25: #{tpu_custom_call.1} parent=11 // pred_check
          %p264 = pneg %p130
        $region26: #{tpu_custom_call.1} parent=11 // pred_check_branch
          %266 = sbr.rel (%p264) target = $region28
        $region27: #{tpu_custom_call.1} parent=11 // pred_region
          _
        $region28: #{tpu_custom_call.1} parent=11 // pred_fallthru
          _
        // Predicated region
        $region29: #{tpu_custom_call.1} parent=11 // pred_check
          %p267 = pneg %p151
        $region30: #{tpu_custom_call.1} parent=11 // pred_check_branch
          %269 = sbr.rel (%p267) target = $region32
        $region31: #{tpu_custom_call.1} parent=11 // pred_region
          _
        $region32: #{tpu_custom_call.1} parent=11 // pred_fallthru
          _
        // Predicated region
        $region33: #{tpu_custom_call.1} parent=11 // pred_check
          %p270 = pneg %p172
        $region34: #{tpu_custom_call.1} parent=11 // pred_check_branch
          %272 = sbr.rel (%p270) target = $region36
        $region35: #{tpu_custom_call.1} parent=11 // pred_region
          _
        $region36: #{tpu_custom_call.1} parent=11 // pred_fallthru
          _
        // Predicated region
        $region37: #{tpu_custom_call.1} parent=11 // pred_check
          %p273 = pneg %p193
        $region38: #{tpu_custom_call.1} parent=11 // pred_check_branch
          %275 = sbr.rel (%p273) target = $region40
        $region39: #{tpu_custom_call.1} parent=11 // pred_region
          _
        $region40: #{tpu_custom_call.1} parent=11 // pred_fallthru
          _
        // Predicated region
        $region41: #{tpu_custom_call.1} parent=11 // pred_check
          %p276 = pneg %p214
        $region42: #{tpu_custom_call.1} parent=11 // pred_check_branch
          %278 = sbr.rel (%p276) target = $region44
        $region43: #{tpu_custom_call.1} parent=11 // pred_region
          _
        $region44: #{tpu_custom_call.1} parent=11 // pred_fallthru
          _
      $region12: #{tpu_custom_call.1} parent=5 // pred_fallthru
        _
      %p279 = scmp.lt.s32.totalorder %s20, 2
      // Predicated region
      $region45: #{tpu_custom_call.1} parent=5 // pred_check
        %p280 = pneg %p279
      $region46: #{tpu_custom_call.1} parent=5 // pred_check_branch
        %282 = sbr.rel (%p280) target = $region48
      $region47: #{tpu_custom_call.1} parent=5 // pred_region
        // Predicated region
        $region49: #{tpu_custom_call.1} parent=47 // pred_check
          %p283 = pneg %p40
        $region50: #{tpu_custom_call.1} parent=47 // pred_check_branch
          %285 = sbr.rel (%p283) target = $region52
        $region51: #{tpu_custom_call.1} parent=47 // pred_region
          %p286 = scmp.lt.s32.totalorder %s20, 1
          %s287 = scalar_select %p286, %s20, 1
          %s288 = smul.addr %s287, 4
          %s289 = scalar_lea.vmem %s0, %s288
        $region52: #{tpu_custom_call.1} parent=47 // pred_fallthru
          _
      $region48: #{tpu_custom_call.1} parent=5 // pred_fallthru
        _
      %p290 = scmp.le.s32.totalorder 1, %s20
      %p291 = scmp.lt.s32.totalorder %s20, 3
      %p292 = pnand %p290, %p291
      %p293 = pneg %p292
      // Predicated region
      $region53: #{tpu_custom_call.1} parent=5 // pred_check
        _
      $region54: #{tpu_custom_call.1} parent=5 // pred_check_branch
        %295 = sbr.rel (%p292) target = $region56
      $region55: #{tpu_custom_call.1} parent=5 // pred_region
        %s296 = ssub.s32 %s20, 1
        %p297 = scmp.lt.s32.totalorder %s25, 1
        %s298 = scalar_select %p297, %s25, 1
        %s299 = smul.addr %s298, 4
        %s300 = scalar_lea.vmem %s0, %s299
        %p301 = pneg %p46
        %p302 = pneg %p43
        %p303 = pneg %p67
        %p304 = pneg %p64
        %p305 = pneg %p88
        %p306 = pneg %p85
        %p307 = pneg %p109
        %p308 = pneg %p106
        %p309 = pneg %p130
        %p310 = pneg %p127
        %p311 = pneg %p151
        %p312 = pneg %p148
        %p313 = pneg %p172
        %p314 = pneg %p169
        %p315 = pneg %p193
        %p316 = pneg %p190
        %p317 = pneg %p214
        %p318 = pneg %p211
        %p319 = pneg %p240
        %p320 = pneg %p237
        %s321 = sand.u32 %s227, 1
        %s322 = scalar_lea.sflag [#allocation4], %s321
        %s323 = sand.u32 %s227, 1
        %s324 = scalar_lea.vmem [#allocation3], %s323
        %p325 = scmp.lt.s32.totalorder %s25, 1
        %s326 = scalar_select %p325, %s25, 1
        %s327 = smul.addr %s326, 4
        %s328 = scalar_lea.vmem %s0, %s327
        %v330 = vld [vmem:[%s1] sm:$0xff]
        %v331 = vld [vmem:[%s1 + $0x8] sm:$0xff]
        %v332 = vld [vmem:[%s1 + $0x10] sm:$0xff]
        %v333 = vld [vmem:[%s1 + $0x18] sm:$0xff]
        %v334 = vld [vmem:[%s1 + $0x20] sm:$0xff]
        %v335 = vld [vmem:[%s1 + $0x28] sm:$0xff]
        %v336 = vld [vmem:[%s1 + $0x30] sm:$0xff]
        %v337 = vld [vmem:[%s1 + $0x38] sm:$0xff]
        %v338 = vld [vmem:[%s328] sm:$0xf]
        %v339 = vld [vmem:[%s2] sm:$0xff]
        %v340 = vld [vmem:[%s2 + $0x8] sm:$0xff]
        %v341 = vld [vmem:[%s2 + $0x10] sm:$0xff]
        %v342 = vld [vmem:[%s2 + $0x18] sm:$0xff]
        %v343 = vld [vmem:[%s2 + $0x20] sm:$0xff]
        %v344 = vld [vmem:[%s2 + $0x28] sm:$0xff]
        %v345 = vld [vmem:[%s2 + $0x30] sm:$0xff]
        %v346 = vld [vmem:[%s2 + $0x38] sm:$0xff]
        %348 = vset.pattern.permute.xlu0 0
        %349 = vperm.xlu0 %348, %v339
        %v350 = vpop.permute.xlu0 %349
        %353 = vset.pattern.permute.xlu0 0
        %354 = vperm.xlu0 %353, %v340
        %v355 = vpop.permute.xlu0 %354
        %358 = vset.pattern.permute.xlu0 0
        %359 = vperm.xlu0 %358, %v341
        %v360 = vpop.permute.xlu0 %359
        %363 = vset.pattern.permute.xlu0 0
        %364 = vperm.xlu0 %363, %v342
        %v365 = vpop.permute.xlu0 %364
        %368 = vset.pattern.permute.xlu0 0
        %369 = vperm.xlu0 %368, %v343
        %v370 = vpop.permute.xlu0 %369
        %373 = vset.pattern.permute.xlu0 0
        %374 = vperm.xlu0 %373, %v344
        %v375 = vpop.permute.xlu0 %374
        %378 = vset.pattern.permute.xlu0 0
        %379 = vperm.xlu0 %378, %v345
        %v380 = vpop.permute.xlu0 %379
        %383 = vset.pattern.permute.xlu0 0
        %384 = vperm.xlu0 %383, %v346
        %v385 = vpop.permute.xlu0 %384
        %vm387 = vcmask 31744
        %v389 = vsel %vm387, %v330, 0
        %v392 = vsel %vm387, %v331, 0
        %v395 = vsel %vm387, %v332, 0
        %v398 = vsel %vm387, %v333, 0
        %v401 = vsel %vm387, %v334, 0
        %v404 = vsel %vm387, %v335, 0
        %v407 = vsel %vm387, %v336, 0
        %v410 = vsel %vm387, %v337, 0
        %vm412 = vcmask 1043456
        %v414 = vsel %vm412, %v338, 0
        %416 = vmatprep.subr.mxu0 0.0
        %417 = vmatpush1.msra.mxu0 %v414
        %418 = vmatprep.subr.mxu0 0.0
        %419 = vmatpush1.msra.mxu0 0.0
        %420 = vmatprep.subr.mxu0 0.0
        %421 = vmatpush1.msra.mxu0 0.0
        %422 = vmatprep.subr.mxu0 0.0
        %423 = vmatpush1.msra.mxu0 0.0
        %424 = vmatprep.subr.mxu0 0.0
        %425 = vmatpush1.msra.mxu0 0.0
        %426 = vmatprep.subr.mxu0 0.0
        %427 = vmatpush1.msra.mxu0 0.0
        %428 = vmatprep.subr.mxu0 0.0
        %429 = vmatpush1.msra.mxu0 0.0
        %430 = vmatprep.subr.mxu0 0.0
        %431 = vmatpush1.msra.mxu0 0.0
        %432 = vmatprep.subr.mxu0 0.0
        %433 = vmatpush1.msra.mxu0 0.0
        %434 = vmatprep.subr.mxu0 0.0
        %435 = vmatpush1.msra.mxu0 0.0
        %436 = vmatprep.subr.mxu0 0.0
        %437 = vmatpush1.msra.mxu0 0.0
        %438 = vmatprep.subr.mxu0 0.0
        %439 = vmatpush1.msra.mxu0 0.0
        %440 = vmatprep.subr.mxu0 0.0
        %441 = vmatpush1.msra.mxu0 0.0
        %442 = vmatprep.subr.mxu0 0.0
        %443 = vmatpush1.msra.mxu0 0.0
        %444 = vmatprep.subr.mxu0 0.0
        %445 = vmatpush1.msra.mxu0 0.0
        %446 = vmatprep.subr.mxu0 0.0
        %447 = vmatpush1.msra.mxu0 0.0
        %448 = vmatprep.subr.mxu0 0.0
        %449 = vmatpush1.msra.mxu0 0.0
        %450 = vmatprep.subr.mxu0 0.0
        %451 = vmatpush1.msra.mxu0 0.0
        %452 = vmatprep.subr.mxu0 0.0
        %453 = vmatpush1.msra.mxu0 0.0
        %454 = vmatprep.subr.mxu0 0.0
        %455 = vmatpush1.msra.mxu0 0.0
        %456 = vmatprep.subr.mxu0 0.0
        %457 = vmatpush1.msra.mxu0 0.0
        %458 = vmatprep.subr.mxu0 0.0
        %459 = vmatpush1.msra.mxu0 0.0
        %460 = vmatprep.subr.mxu0 0.0
        %461 = vmatpush1.msra.mxu0 0.0
        %462 = vmatprep.subr.mxu0 0.0
        %463 = vmatpush1.msra.mxu0 0.0
        %464 = vmatprep.subr.mxu0 0.0
        %465 = vmatpush1.msra.mxu0 0.0
        %466 = vmatprep.subr.mxu0 0.0
        %467 = vmatpush1.msra.mxu0 0.0
        %468 = vmatprep.subr.mxu0 0.0
        %469 = vmatpush1.msra.mxu0 0.0
        %470 = vmatprep.subr.mxu0 0.0
        %471 = vmatpush1.msra.mxu0 0.0
        %472 = vmatprep.subr.mxu0 0.0
        %473 = vmatpush1.msra.mxu0 0.0
        %474 = vmatprep.subr.mxu0 0.0
        %475 = vmatpush1.msra.mxu0 0.0
        %476 = vmatprep.subr.mxu0 0.0
        %477 = vmatpush1.msra.mxu0 0.0
        %478 = vmatprep.subr.mxu0 0.0
        %479 = vmatpush1.msra.mxu0 0.0
        %480 = vmatprep.mubr.f32.mxu0 0.0
        %481 = vmatmul.mubr.f32.gmra.mrb[0].mxu0 %v389
        %v482 = vpop.f32.mrb[0].mxu0
        %v483 = vadd.f32 %v350, %v482
        %v484 = vpop.f32.mrb[0].mxu0
        %485 = vmatprep.mubr.f32.mxu0 0.0
        %486 = vmatmul.mubr.f32.gmra.mrb[0].mxu0 %v392
        %v487 = vpop.f32.mrb[0].mxu0
        %v488 = vadd.f32 %v355, %v487
        %v489 = vpop.f32.mrb[0].mxu0
        %490 = vmatprep.mubr.f32.mxu0 0.0
        %491 = vmatmul.mubr.f32.gmra.mrb[0].mxu0 %v395
        %v492 = vpop.f32.mrb[0].mxu0
        %v493 = vadd.f32 %v360, %v492
        %v494 = vpop.f32.mrb[0].mxu0
        %495 = vmatprep.mubr.f32.mxu0 0.0
        %496 = vmatmul.mubr.f32.gmra.mrb[0].mxu0 %v398
        %v497 = vpop.f32.mrb[0].mxu0
        %v498 = vadd.f32 %v365, %v497
        %v499 = vpop.f32.mrb[0].mxu0
        %500 = vmatprep.mubr.f32.mxu0 0.0
        %501 = vmatmul.mubr.f32.gmra.mrb[0].mxu0 %v401
        %v502 = vpop.f32.mrb[0].mxu0
        %v503 = vadd.f32 %v370, %v502
        %v504 = vpop.f32.mrb[0].mxu0
        %505 = vmatprep.mubr.f32.mxu0 0.0
        %506 = vmatmul.mubr.f32.gmra.mrb[0].mxu0 %v404
        %v507 = vpop.f32.mrb[0].mxu0
        %v508 = vadd.f32 %v375, %v507
        %v509 = vpop.f32.mrb[0].mxu0
        %510 = vmatprep.mubr.f32.mxu0 0.0
        %511 = vmatmul.mubr.f32.gmra.mrb[0].mxu0 %v407
        %v512 = vpop.f32.mrb[0].mxu0
        %v513 = vadd.f32 %v380, %v512
        %v514 = vpop.f32.mrb[0].mxu0
        %515 = vmatprep.mubr.f32.mxu0 0.0
        %516 = vmatmul.mubr.f32.gmra.mrb[0].mxu0 %v410
        %v517 = vpop.f32.mrb[0].mxu0
        %v518 = vadd.f32 %v385, %v517
        %v519 = vpop.f32.mrb[0].mxu0
        %520 = vdwg.mxu0
        %v521 = vmax.f32 %v483, 0.0
        %v522 = vmax.f32 %v488, 0.0
        %v523 = vmax.f32 %v493, 0.0
        %v524 = vmax.f32 %v498, 0.0
        %v525 = vmax.f32 %v503, 0.0
        %v526 = vmax.f32 %v508, 0.0
        %v527 = vmax.f32 %v513, 0.0
        %v528 = vmax.f32 %v518, 0.0
        %v529 = vld [vmem:[%s3] sm:$0xf]
        %v530 = vld [vmem:[%s3 + $0x4] sm:$0xf]
        %v531 = vld [vmem:[%s3 + $0x8] sm:$0xf]
        %v532 = vld [vmem:[%s3 + $0xc] sm:$0xf]
        %v533 = vld [vmem:[%s3 + $0x10] sm:$0xf]
        %v534 = vld [vmem:[%s3 + $0x14] sm:$0xf]
        %v535 = vld [vmem:[%s3 + $0x18] sm:$0xf]
        %v536 = vld [vmem:[%s3 + $0x1c] sm:$0xf]
        %v537 = vld [vmem:[%s3 + $0x20] sm:$0xf]
        %v538 = vld [vmem:[%s3 + $0x24] sm:$0xf]
        %v539 = vld [vmem:[%s3 + $0x28] sm:$0xf]
        %v540 = vld [vmem:[%s3 + $0x2c] sm:$0xf]
        %v541 = vld [vmem:[%s3 + $0x30] sm:$0xf]
        %v542 = vld [vmem:[%s3 + $0x34] sm:$0xf]
        %v543 = vld [vmem:[%s3 + $0x38] sm:$0xf]
        %v544 = vld [vmem:[%s3 + $0x3c] sm:$0xf]
        %v545 = vpack.c.bf16 %v522, %v521
        %v546 = vpack.c.bf16 %v524, %v523
        %v547 = vpack.c.bf16 %v526, %v525
        %v548 = vpack.c.bf16 %v528, %v527
        %v549 = vld [vmem:[%s4] sm:$0xff]
        %v550 = vld [vmem:[%s4 + $0x8] sm:$0xff]
        %v551 = vld [vmem:[%s4 + $0x10] sm:$0xff]
        %v552 = vld [vmem:[%s4 + $0x18] sm:$0xff]
        %v553 = vld [vmem:[%s4 + $0x20] sm:$0xff]
        %v554 = vld [vmem:[%s4 + $0x28] sm:$0xff]
        %v555 = vld [vmem:[%s4 + $0x30] sm:$0xff]
        %v556 = vld [vmem:[%s4 + $0x38] sm:$0xff]
        %v557 = vld [vmem:[%s4 + $0x40] sm:$0xff]
        %v558 = vld [vmem:[%s4 + $0x48] sm:$0xff]
        %v559 = vld [vmem:[%s4 + $0x50] sm:$0xff]
        %v560 = vld [vmem:[%s4 + $0x58] sm:$0xff]
        %v561 = vld [vmem:[%s4 + $0x60] sm:$0xff]
        %v562 = vld [vmem:[%s4 + $0x68] sm:$0xff]
        %v563 = vld [vmem:[%s4 + $0x70] sm:$0xff]
        %v564 = vld [vmem:[%s4 + $0x78] sm:$0xff]
        %566 = vset.pattern.permute.xlu0 0
        %567 = vperm.xlu0 %566, %v549
        %v568 = vpop.permute.xlu0 %567
        %571 = vset.pattern.permute.xlu0 0
        %572 = vperm.xlu0 %571, %v550
        %v573 = vpop.permute.xlu0 %572
        %576 = vset.pattern.permute.xlu0 0
        %577 = vperm.xlu0 %576, %v551
        %v578 = vpop.permute.xlu0 %577
        %581 = vset.pattern.permute.xlu0 0
        %582 = vperm.xlu0 %581, %v552
        %v583 = vpop.permute.xlu0 %582
        %586 = vset.pattern.permute.xlu0 0
        %587 = vperm.xlu0 %586, %v553
        %v588 = vpop.permute.xlu0 %587
        %591 = vset.pattern.permute.xlu0 0
        %592 = vperm.xlu0 %591, %v554
        %v593 = vpop.permute.xlu0 %592
        %596 = vset.pattern.permute.xlu0 0
        %597 = vperm.xlu0 %596, %v555
        %v598 = vpop.permute.xlu0 %597
        %601 = vset.pattern.permute.xlu0 0
        %602 = vperm.xlu0 %601, %v556
        %v603 = vpop.permute.xlu0 %602
        %606 = vset.pattern.permute.xlu0 0
        %607 = vperm.xlu0 %606, %v557
        %v608 = vpop.permute.xlu0 %607
        %611 = vset.pattern.permute.xlu0 0
        %612 = vperm.xlu0 %611, %v558
        %v613 = vpop.permute.xlu0 %612
        %616 = vset.pattern.permute.xlu0 0
        %617 = vperm.xlu0 %616, %v559
        %v618 = vpop.permute.xlu0 %617
        %621 = vset.pattern.permute.xlu0 0
        %622 = vperm.xlu0 %621, %v560
        %v623 = vpop.permute.xlu0 %622
        %626 = vset.pattern.permute.xlu0 0
        %627 = vperm.xlu0 %626, %v561
        %v628 = vpop.permute.xlu0 %627
        %631 = vset.pattern.permute.xlu0 0
        %632 = vperm.xlu0 %631, %v562
        %v633 = vpop.permute.xlu0 %632
        %636 = vset.pattern.permute.xlu0 0
        %637 = vperm.xlu0 %636, %v563
        %v638 = vpop.permute.xlu0 %637
        %641 = vset.pattern.permute.xlu0 0
        %642 = vperm.xlu0 %641, %v564
        %v643 = vpop.permute.xlu0 %642
        %v661 = vunpack.c.l.b16 %v529
        %v662 = vunpack.c.l.b16 %v530
        %v663 = vunpack.c.l.b16 %v531
        %v664 = vunpack.c.l.b16 %v532
        %v665 = vunpack.c.l.b16 %v533
        %v666 = vunpack.c.l.b16 %v534
        %v667 = vunpack.c.l.b16 %v535
        %v668 = vunpack.c.l.b16 %v536
        %v669 = vunpack.c.l.b16 %v537
        %v670 = vunpack.c.l.b16 %v538
        %v671 = vunpack.c.l.b16 %v539
        %v672 = vunpack.c.l.b16 %v540
        %v673 = vunpack.c.l.b16 %v541
        %v674 = vunpack.c.l.b16 %v542
        %v675 = vunpack.c.l.b16 %v543
        %v676 = vunpack.c.l.b16 %v544
        %v677 = vpack.c.b16 %v662, %v661
        %v678 = vpack.c.b16 %v664, %v663
        %v679 = vpack.c.b16 %v666, %v665
        %v680 = vpack.c.b16 %v668, %v667
        %v681 = vpack.c.b16 %v670, %v669
        %v682 = vpack.c.b16 %v672, %v671
        %v683 = vpack.c.b16 %v674, %v673
        %v684 = vpack.c.b16 %v676, %v675
        %vm685 = vcmask 523264
        %v687 = vsel %vm685, %v677, 0
        %v690 = vsel %vm685, %v678, 0
        %v693 = vsel %vm685, %v679, 0
        %v696 = vsel %vm685, %v680, 0
        %v699 = vsel %vm685, %v681, 0
        %v702 = vsel %vm685, %v682, 0
        %v705 = vsel %vm685, %v683, 0
        %v708 = vsel %vm685, %v684, 0
        %710 = vmatprep.subr.bf16.mxu0 0
        %711 = vmatpush1.bf16.msra.mxu0 %v545
        %712 = vmatprep.subr.bf16.mxu0 0
        %713 = vmatpush1.bf16.msra.mxu0 %v546
        %714 = vmatprep.subr.bf16.mxu0 0
        %715 = vmatpush1.bf16.msra.mxu0 %v547
        %716 = vmatprep.subr.bf16.mxu0 0
        %717 = vmatpush1.bf16.msra.mxu0 %v548
        %718 = vmatprep.subr.bf16.mxu0 0
        %719 = vmatpush1.bf16.msra.mxu0 0
        %720 = vmatprep.subr.bf16.mxu0 0
        %721 = vmatpush1.bf16.msra.mxu0 0
        %722 = vmatprep.subr.bf16.mxu0 0
        %723 = vmatpush1.bf16.msra.mxu0 0
        %724 = vmatprep.subr.bf16.mxu0 0
        %725 = vmatpush1.bf16.msra.mxu0 0
        %726 = vmatprep.subr.bf16.mxu0 0
        %727 = vmatpush1.bf16.msra.mxu0 0
        %728 = vmatprep.subr.bf16.mxu0 0
        %729 = vmatpush1.bf16.msra.mxu0 0
        %730 = vmatprep.subr.bf16.mxu0 0
        %731 = vmatpush1.bf16.msra.mxu0 0
        %732 = vmatprep.subr.bf16.mxu0 0
        %733 = vmatpush1.bf16.msra.mxu0 0
        %734 = vmatprep.subr.bf16.mxu0 0
        %735 = vmatpush1.bf16.msra.mxu0 0
        %736 = vmatprep.subr.bf16.mxu0 0
        %737 = vmatpush1.bf16.msra.mxu0 0
        %738 = vmatprep.subr.bf16.mxu0 0
        %739 = vmatpush1.bf16.msra.mxu0 0
        %740 = vmatprep.subr.bf16.mxu0 0
        %741 = vmatpush1.bf16.msra.mxu0 0
        %742 = vmatprep.mubr.bf16.mxu0 0
        %743 = vmatmul.mubr.bf16.gmra.mrb[0].mxu0 %v687
        %v744 = vpop.f32.mrb[0].mxu0
        %v745 = vadd.f32 %v568, %v744
        %v746 = vpop.f32.mrb[0].mxu0
        %v747 = vpop.f32.mrb[0].mxu0
        %v748 = vadd.f32 %v573, %v747
        %v749 = vpop.f32.mrb[0].mxu0
        %750 = vmatprep.mubr.bf16.mxu0 0
        %751 = vmatmul.mubr.bf16.gmra.mrb[0].mxu0 %v690
        %v752 = vpop.f32.mrb[0].mxu0
        %v753 = vadd.f32 %v578, %v752
        %v754 = vpop.f32.mrb[0].mxu0
        %v755 = vpop.f32.mrb[0].mxu0
        %v756 = vadd.f32 %v583, %v755
        %v757 = vpop.f32.mrb[0].mxu0
        %758 = vmatprep.mubr.bf16.mxu0 0
        %759 = vmatmul.mubr.bf16.gmra.mrb[0].mxu0 %v693
        %v760 = vpop.f32.mrb[0].mxu0
        %v761 = vadd.f32 %v588, %v760
        %v762 = vpop.f32.mrb[0].mxu0
        %v763 = vpop.f32.mrb[0].mxu0
        %v764 = vadd.f32 %v593, %v763
        %v765 = vpop.f32.mrb[0].mxu0
        %766 = vmatprep.mubr.bf16.mxu0 0
        %767 = vmatmul.mubr.bf16.gmra.mrb[0].mxu0 %v696
        %v768 = vpop.f32.mrb[0].mxu0
        %v769 = vadd.f32 %v598, %v768
        %v770 = vpop.f32.mrb[0].mxu0
        %v771 = vpop.f32.mrb[0].mxu0
        %v772 = vadd.f32 %v603, %v771
        %v773 = vpop.f32.mrb[0].mxu0
        %774 = vmatprep.mubr.bf16.mxu0 0
        %775 = vmatmul.mubr.bf16.gmra.mrb[0].mxu0 %v699
        %v776 = vpop.f32.mrb[0].mxu0
        %v777 = vadd.f32 %v608, %v776
        %v778 = vpop.f32.mrb[0].mxu0
        %v779 = vpop.f32.mrb[0].mxu0
        %v780 = vadd.f32 %v613, %v779
        %v781 = vpop.f32.mrb[0].mxu0
        %782 = vmatprep.mubr.bf16.mxu0 0
        %783 = vmatmul.mubr.bf16.gmra.mrb[0].mxu0 %v702
        %v784 = vpop.f32.mrb[0].mxu0
        %v785 = vadd.f32 %v618, %v784
        %v786 = vpop.f32.mrb[0].mxu0
        %v787 = vpop.f32.mrb[0].mxu0
        %v788 = vadd.f32 %v623, %v787
        %v789 = vpop.f32.mrb[0].mxu0
        %790 = vmatprep.mubr.bf16.mxu0 0
        %791 = vmatmul.mubr.bf16.gmra.mrb[0].mxu0 %v705
        %v792 = vpop.f32.mrb[0].mxu0
        %v793 = vadd.f32 %v628, %v792
        %v794 = vpop.f32.mrb[0].mxu0
        %v795 = vpop.f32.mrb[0].mxu0
        %v796 = vadd.f32 %v633, %v795
        %v797 = vpop.f32.mrb[0].mxu0
        %798 = vmatprep.mubr.bf16.mxu0 0
        %799 = vmatmul.mubr.bf16.gmra.mrb[0].mxu0 %v708
        %v800 = vpop.f32.mrb[0].mxu0
        %v801 = vadd.f32 %v638, %v800
        %v802 = vpop.f32.mrb[0].mxu0
        %v803 = vpop.f32.mrb[0].mxu0
        %v804 = vadd.f32 %v643, %v803
        %v805 = vpop.f32.mrb[0].mxu0
        %806 = vdwg.mxu0
        %v807 = vmax.f32 %v745, 0.0
        %v808 = vmax.f32 %v748, 0.0
        %v809 = vmax.f32 %v753, 0.0
        %v810 = vmax.f32 %v756, 0.0
        %v811 = vmax.f32 %v761, 0.0
        %v812 = vmax.f32 %v764, 0.0
        %v813 = vmax.f32 %v769, 0.0
        %v814 = vmax.f32 %v772, 0.0
        %v815 = vmax.f32 %v777, 0.0
        %v816 = vmax.f32 %v780, 0.0
        %v817 = vmax.f32 %v785, 0.0
        %v818 = vmax.f32 %v788, 0.0
        %v819 = vmax.f32 %v793, 0.0
        %v820 = vmax.f32 %v796, 0.0
        %v821 = vmax.f32 %v801, 0.0
        %v822 = vmax.f32 %v804, 0.0
        %v823 = vld [vmem:[%s5] sm:$0xf]
        %v824 = vld [vmem:[%s5 + $0x4] sm:$0xf]
        %v825 = vld [vmem:[%s5 + $0x8] sm:$0xf]
        %v826 = vld [vmem:[%s5 + $0xc] sm:$0xf]
        %v827 = vld [vmem:[%s5 + $0x10] sm:$0xf]
        %v828 = vld [vmem:[%s5 + $0x14] sm:$0xf]
        %v829 = vld [vmem:[%s5 + $0x18] sm:$0xf]
        %v830 = vld [vmem:[%s5 + $0x1c] sm:$0xf]
        %v831 = vpack.c.bf16 %v808, %v807
        %v832 = vpack.c.bf16 %v810, %v809
        %v833 = vpack.c.bf16 %v812, %v811
        %v834 = vpack.c.bf16 %v814, %v813
        %v835 = vpack.c.bf16 %v816, %v815
        %v836 = vpack.c.bf16 %v818, %v817
        %v837 = vpack.c.bf16 %v820, %v819
        %v838 = vpack.c.bf16 %v822, %v821
        %v839 = vld [vmem:[%s6] sm:$0xff]
        %v840 = vld [vmem:[%s6 + $0x8] sm:$0xff]
        %v841 = vld [vmem:[%s6 + $0x10] sm:$0xff]
        %v842 = vld [vmem:[%s6 + $0x18] sm:$0xff]
        %v843 = vld [vmem:[%s6 + $0x20] sm:$0xff]
        %v844 = vld [vmem:[%s6 + $0x28] sm:$0xff]
        %v845 = vld [vmem:[%s6 + $0x30] sm:$0xff]
        %v846 = vld [vmem:[%s6 + $0x38] sm:$0xff]
        %848 = vset.pattern.permute.xlu0 0
        %849 = vperm.xlu0 %848, %v839
        %v850 = vpop.permute.xlu0 %849
        %853 = vset.pattern.permute.xlu0 0
        %854 = vperm.xlu0 %853, %v840
        %v855 = vpop.permute.xlu0 %854
        %858 = vset.pattern.permute.xlu0 0
        %859 = vperm.xlu0 %858, %v841
        %v860 = vpop.permute.xlu0 %859
        %863 = vset.pattern.permute.xlu0 0
        %864 = vperm.xlu0 %863, %v842
        %v865 = vpop.permute.xlu0 %864
        %868 = vset.pattern.permute.xlu0 0
        %869 = vperm.xlu0 %868, %v843
        %v870 = vpop.permute.xlu0 %869
        %873 = vset.pattern.permute.xlu0 0
        %874 = vperm.xlu0 %873, %v844
        %v875 = vpop.permute.xlu0 %874
        %878 = vset.pattern.permute.xlu0 0
        %879 = vperm.xlu0 %878, %v845
        %v880 = vpop.permute.xlu0 %879
        %883 = vset.pattern.permute.xlu0 0
        %884 = vperm.xlu0 %883, %v846
        %v885 = vpop.permute.xlu0 %884
        %v895 = vunpack.c.l.b16 %v823
        %v896 = vunpack.c.l.b16 %v824
        %v897 = vunpack.c.l.b16 %v825
        %v898 = vunpack.c.l.b16 %v826
        %v899 = vunpack.c.l.b16 %v827
        %v900 = vunpack.c.l.b16 %v828
        %v901 = vunpack.c.l.b16 %v829
        %v902 = vunpack.c.l.b16 %v830
        %v903 = vpack.c.b16 %v896, %v895
        %v904 = vpack.c.b16 %v898, %v897
        %v905 = vpack.c.b16 %v900, %v899
        %v906 = vpack.c.b16 %v902, %v901
        %911 = vmatprep.subr.bf16.mxu0 0
        %912 = vmatpush1.bf16.msra.mxu0 %v831
        %913 = vmatprep.subr.bf16.mxu0 0
        %914 = vmatpush1.bf16.msra.mxu0 %v832
        %915 = vmatprep.subr.bf16.mxu0 0
        %916 = vmatpush1.bf16.msra.mxu0 %v833
        %917 = vmatprep.subr.bf16.mxu0 0
        %918 = vmatpush1.bf16.msra.mxu0 %v834
        %919 = vmatprep.subr.bf16.mxu0 0
        %920 = vmatpush1.bf16.msra.mxu0 %v835
        %921 = vmatprep.subr.bf16.mxu0 0
        %922 = vmatpush1.bf16.msra.mxu0 %v836
        %923 = vmatprep.subr.bf16.mxu0 0
        %924 = vmatpush1.bf16.msra.mxu0 %v837
        %925 = vmatprep.subr.bf16.mxu0 0
        %926 = vmatpush1.bf16.msra.mxu0 %v838
        %927 = vmatprep.subr.bf16.mxu0 0
        %928 = vmatpush1.bf16.msra.mxu0 0
        %929 = vmatprep.subr.bf16.mxu0 0
        %930 = vmatpush1.bf16.msra.mxu0 0
        %931 = vmatprep.subr.bf16.mxu0 0
        %932 = vmatpush1.bf16.msra.mxu0 0
        %933 = vmatprep.subr.bf16.mxu0 0
        %934 = vmatpush1.bf16.msra.mxu0 0
        %935 = vmatprep.subr.bf16.mxu0 0
        %936 = vmatpush1.bf16.msra.mxu0 0
        %937 = vmatprep.subr.bf16.mxu0 0
        %938 = vmatpush1.bf16.msra.mxu0 0
        %939 = vmatprep.subr.bf16.mxu0 0
        %940 = vmatpush1.bf16.msra.mxu0 0
        %941 = vmatprep.subr.bf16.mxu0 0
        %942 = vmatpush1.bf16.msra.mxu0 0
        %943 = vmatprep.mubr.bf16.mxu0 0
        %944 = vmatmul.mubr.bf16.gmra.mrb[0].mxu0 %v903
        %v945 = vpop.f32.mrb[0].mxu0
        %v946 = vadd.f32 %v850, %v945
        %v947 = vpop.f32.mrb[0].mxu0
        %v948 = vpop.f32.mrb[0].mxu0
        %v949 = vadd.f32 %v855, %v948
        %v950 = vpop.f32.mrb[0].mxu0
        %951 = vmatprep.mubr.bf16.mxu0 0
        %952 = vmatmul.mubr.bf16.gmra.mrb[0].mxu0 %v904
        %v953 = vpop.f32.mrb[0].mxu0
        %v954 = vadd.f32 %v860, %v953
        %v955 = vpop.f32.mrb[0].mxu0
        %v956 = vpop.f32.mrb[0].mxu0
        %v957 = vadd.f32 %v865, %v956
        %v958 = vpop.f32.mrb[0].mxu0
        %959 = vmatprep.mubr.bf16.mxu0 0
        %960 = vmatmul.mubr.bf16.gmra.mrb[0].mxu0 %v905
        %v961 = vpop.f32.mrb[0].mxu0
        %v962 = vadd.f32 %v870, %v961
        %v963 = vpop.f32.mrb[0].mxu0
        %v964 = vpop.f32.mrb[0].mxu0
        %v965 = vadd.f32 %v875, %v964
        %v966 = vpop.f32.mrb[0].mxu0
        %967 = vmatprep.mubr.bf16.mxu0 0
        %968 = vmatmul.mubr.bf16.gmra.mrb[0].mxu0 %v906
        %v969 = vpop.f32.mrb[0].mxu0
        %v970 = vadd.f32 %v880, %v969
        %v971 = vpop.f32.mrb[0].mxu0
        %v972 = vpop.f32.mrb[0].mxu0
        %v973 = vadd.f32 %v885, %v972
        %v974 = vpop.f32.mrb[0].mxu0
        %975 = vdwg.mxu0
        %v976 = vmax.f32 %v946, 0.0
        %v977 = vmax.f32 %v949, 0.0
        %v978 = vmax.f32 %v954, 0.0
        %v979 = vmax.f32 %v957, 0.0
        %v980 = vmax.f32 %v962, 0.0
        %v981 = vmax.f32 %v965, 0.0
        %v982 = vmax.f32 %v970, 0.0
        %v983 = vmax.f32 %v973, 0.0
        %v984 = vld [vmem:[%s7] sm:$0x1]
        %v985 = vpack.c.bf16 %v977, %v976
        %v986 = vpack.c.bf16 %v979, %v978
        %v987 = vpack.c.bf16 %v981, %v980
        %v988 = vpack.c.bf16 %v983, %v982
        %v989 = vld [vmem:[#allocation2] sm:$0x1]
        %991 = vset.pattern.permute.xlu0 0
        %992 = vperm.xlu0 %991, %v989
        %v993 = vpop.permute.xlu0 %992
        %v995 = vlaneseq
        %v996 = vshrl.u32 %v995, 7
        %v997 = vsub.s32 0, %v996
        %v998 = vrot.slane %v993, %v997
        %v1000 = vsel %vm685, %v984, 0
        %1002 = vmatprep.subr.bf16.mxu0 0
        %1003 = vmatpush1.bf16.msra.mxu0 %v985
        %1004 = vmatprep.subr.bf16.mxu0 0
        %1005 = vmatpush1.bf16.msra.mxu0 %v986
        %1006 = vmatprep.subr.bf16.mxu0 0
        %1007 = vmatpush1.bf16.msra.mxu0 %v987
        %1008 = vmatprep.subr.bf16.mxu0 0
        %1009 = vmatpush1.bf16.msra.mxu0 %v988
        %1010 = vmatprep.subr.bf16.mxu0 0
        %1011 = vmatpush1.bf16.msra.mxu0 0
        %1012 = vmatprep.subr.bf16.mxu0 0
        %1013 = vmatpush1.bf16.msra.mxu0 0
        %1014 = vmatprep.subr.bf16.mxu0 0
        %1015 = vmatpush1.bf16.msra.mxu0 0
        %1016 = vmatprep.subr.bf16.mxu0 0
        %1017 = vmatpush1.bf16.msra.mxu0 0
        %1018 = vmatprep.subr.bf16.mxu0 0
        %1019 = vmatpush1.bf16.msra.mxu0 0
        %1020 = vmatprep.subr.bf16.mxu0 0
        %1021 = vmatpush1.bf16.msra.mxu0 0
        %1022 = vmatprep.subr.bf16.mxu0 0
        %1023 = vmatpush1.bf16.msra.mxu0 0
        %1024 = vmatprep.subr.bf16.mxu0 0
        %1025 = vmatpush1.bf16.msra.mxu0 0
        %1026 = vmatprep.subr.bf16.mxu0 0
        %1027 = vmatpush1.bf16.msra.mxu0 0
        %1028 = vmatprep.subr.bf16.mxu0 0
        %1029 = vmatpush1.bf16.msra.mxu0 0
        %1030 = vmatprep.subr.bf16.mxu0 0
        %1031 = vmatpush1.bf16.msra.mxu0 0
        %1032 = vmatprep.subr.bf16.mxu0 0
        %1033 = vmatpush1.bf16.msra.mxu0 0
        %1034 = vmatprep.mubr.bf16.mxu0 0
        %1035 = vmatmul.mubr.bf16.gmra.mrb[0].mxu0 %v1000
        %v1036 = vpop.f32.mrb[0].mxu0
        %v1037 = vadd.f32 %v998, %v1036
        %v1038 = vpop.f32.mrb[0].mxu0
        %v1039 = vpop.f32.mrb[0].mxu0
        %v1040 = vpop.f32.mrb[0].mxu0
        %1041 = vdwg.mxu0
        %1042 = vst [vmem:[%s324] sm:$0x1] %v1037
        %s1043 = sand.u32 %s227, 1
        %s1044 = scalar_lea.sflag [#allocation4], %s1043
        %s1045 = sand.u32 %s227, 1
        %s1046 = scalar_lea.vmem [#allocation3], %s1045
        // Predicated region
        $region57: #{tpu_custom_call.1} parent=55 // pred_check
          %p1047 = pneg %p237
        $region58: #{tpu_custom_call.1} parent=55 // pred_check_branch
          %1049 = sbr.rel (%p1047) target = $region60
        $region59: #{tpu_custom_call.1} parent=55 // pred_region
          %s1051 = ssub.s32 16, 16
          %1052 = vsyncadd %s1044, %s1051
          %s1053 = smul.addr %s25, 16
          %s1054 = scalar_lea.hbm %s9, %s1053
          %s1056 = sshll.u32 %s1046, 4
          %s1057 = int_to_ptr.vmem [resolvable:$true] %s1056
          %1059 = dma.vmem_to_hbm [thread:$0]  %s1057, 16, %s1054, %s1044
        $region60: #{tpu_custom_call.1} parent=55 // pred_fallthru
          _
      $region56: #{tpu_custom_call.1} parent=5 // pred_fallthru
        _
      %p1060 = scmp.le.s32.totalorder 2, %s20
      // Predicated region
      $region61: #{tpu_custom_call.1} parent=5 // pred_check
        %p1061 = pneg %p1060
      $region62: #{tpu_custom_call.1} parent=5 // pred_check_branch
        %1063 = sbr.rel (%p1061) target = $region64
      $region63: #{tpu_custom_call.1} parent=5 // pred_region
        %s1064 = ssub.s32 %s20, 2
        // Predicated region
        $region65: #{tpu_custom_call.1} parent=63 // pred_check
          %p1065 = pneg %p243
        $region66: #{tpu_custom_call.1} parent=63 // pred_check_branch
          %1067 = sbr.rel (%p1065) target = $region68
        $region67: #{tpu_custom_call.1} parent=63 // pred_region
          %s1068 = sand.u32 %s228, 1
          %s1069 = scalar_lea.sflag [#allocation4], %s1068
          %s1070 = sand.u32 %s228, 1
          %s1071 = scalar_lea.vmem [#allocation3], %s1070
          %1072 = dma.done %s1069, 16
        $region68: #{tpu_custom_call.1} parent=63 // pred_fallthru
          _
      $region64: #{tpu_custom_call.1} parent=5 // pred_fallthru
        _
    $region6: #{tpu_custom_call.1} parent=1 // loop_footer
      %s24 = sadd.s32 1, %s20
    $region7: #{tpu_custom_call.1} parent=1 // loop_footer_branch
      %19 = sbr.rel target = $region3
    $region8: #{tpu_custom_call.1} parent=1 // loop_exit
      _
    %1073 = vsyncpa [#allocation4], 1
    %s1074 = scalar_lea.sflag [#allocation4], 1
    %1075 = vsyncpa %s1074, 1

</llo_original>
